<compile_context>
chip_gen: v6e
topology: v6e:2x2x1
jax: 0.10.0
libtpu: 0.0.40
codegen_flags: <defaults>
</compile_context>

<pallas_src>
import numpy as np
import jax
import jax.numpy as jnp
from jax import lax
from jax.experimental import pallas as pl
from jax.experimental.pallas import tpu as pltpu

# ---------------- synthetic "config" (small but structurally faithful) -------
SAMPLE_RATE = 16000
N_FFT = 256
HOP_LEN = 128                    # n_fft == 2*hop  =>  frame t = [chunk_t ; chunk_{t+1}]
N_MELS = 32
N_FREQ = N_FFT // 2 + 1          # 129 onesided rfft bins
F = 128                          # packed bins 0..127 (Nyquist dropped; fb col 128 == 0)
F_MIN = 20.0
F_MAX = SAMPLE_RATE // 2
LANE = 128


def _round_up(x, m):
    return (x + m - 1) // m * m


# ---------------- deterministic parameter construction (plain numpy glue) ----
def hann_window(n_fft):
    n = np.arange(n_fft)
    return 0.5 * (1.0 - np.cos(2.0 * np.pi * n / n_fft))


def mel_fbanks_t(n_freqs, f_min, f_max, n_mels, sample_rate):
    # torchaudio.functional.melscale_fbanks defaults: mel_scale="htk", norm=None.
    def hz_to_mel(f):
        return 2595.0 * np.log10(1.0 + f / 700.0)

    def mel_to_hz(m):
        return 700.0 * (10.0 ** (m / 2595.0) - 1.0)

    all_freqs = np.linspace(0.0, sample_rate // 2, n_freqs)
    m_pts = np.linspace(hz_to_mel(f_min), hz_to_mel(f_max), n_mels + 2)
    f_pts = mel_to_hz(m_pts)
    f_diff = f_pts[1:] - f_pts[:-1]
    slopes = f_pts[None, :] - all_freqs[:, None]              # (n_freqs, n_mels+2)
    down = -slopes[:, :-2] / f_diff[:-1]
    up = slopes[:, 2:] / f_diff[1:]
    fb = np.maximum(0.0, np.minimum(down, up))                # (n_freqs, n_mels)
    return fb.T                                               # (n_mels, n_freqs)


def build_weights():
    """Hann window folded into the DFT; cos/sin stacked into one exact (256, 256) LHS.

    Returns:
      w_dft: (2*F, N_FFT) = (256, 256)  rows 0..127 = cos_k*win, rows 128..255 = -sin_k*win
      fb_t : (N_MELS, F)  = (32, 128)   mel filterbank for bins 0..127
    """
    win = hann_window(N_FFT)[None, :]
    n = np.arange(N_FFT)[None, :]
    k = np.arange(F)[:, None]
    ang = 2.0 * np.pi * k * n / N_FFT
    cos_w = np.cos(ang) * win
    sin_w = -np.sin(ang) * win
    w = np.concatenate([cos_w, sin_w], axis=0).astype(np.float32)   # (256, 256)

    fb_full = mel_fbanks_t(N_FREQ, F_MIN, F_MAX, N_MELS, SAMPLE_RATE)  # (32, 129)
    # Dropping the Nyquist bin is exact: with f_max == sample_rate // 2 its filterbank
    # column is (numerically) zero.  Assert so a config change can't silently break it.
    assert float(np.abs(fb_full[:, F:]).max()) < 1e-6
    fb = fb_full[:, :F].astype(np.float32)                             # (32, 128)
    return w, fb


# ---------------- pin the pltpu.roll direction with a one-time probe ---------
_ROLL_IS_NUMPY_CONVENTION = None


def _roll_matches_numpy():
    """True iff pltpu.roll(x, +1, axis) == np.roll(x, +1, axis) on this backend."""
    global _ROLL_IS_NUMPY_CONVENTION
    if _ROLL_IS_NUMPY_CONVENTION is None:
        def probe(x_ref, o_ref):
            o_ref[...] = pltpu.roll(x_ref[...], shift=1, axis=1)

        x = jnp.arange(8 * LANE, dtype=jnp.float32).reshape(8, LANE)
        y = pl.pallas_call(
            probe, out_shape=jax.ShapeDtypeStruct((8, LANE), jnp.float32)
        )(x)
        _ROLL_IS_NUMPY_CONVENTION = bool(jnp.array_equal(y, jnp.roll(x, 1, axis=1)))
    return _ROLL_IS_NUMPY_CONVENTION


def _plus_one_chunk_shift(nc):
    """pltpu.roll shift realizing out[:, j] = x[:, (j + 1) % nc]."""
    return (nc - 1) if _roll_matches_numpy() else 1


# ---------------- Pallas kernel: framing -> DFT -> power -> mel -> norm_mel --
def _make_kernel(t_real, t_pad, bot_shift):
    def log_mel_kernel(chunks_ref, w_ref, fb_ref, out_ref):
        # chunks_ref: (1, HOP, nc)  hop-sized chunks of reflect-padded wav, lane = chunk idx
        # w_ref     : (256, 256)    stacked windowed [cos; -sin] DFT rows
        # fb_ref    : (N_MELS, F)   mel filterbank (Nyquist column dropped, see build_weights)
        # out_ref   : (1, N_MELS, t_pad)
        ch = chunks_ref[0]                                       # (HOP, nc)
        top = ch[:, :t_pad]                                      # chunk t     -> frame[:128]
        # chunk t+1 -> frame[128:], via an XLU lane rotate (no unaligned shifted copy).
        bot = pltpu.roll(ch, shift=bot_shift, axis=1)[:, :t_pad]
        frames = jnp.concatenate([top, bot], axis=0)             # (256, t_pad)

        # Single K=256 MXU pass over the frame data.
        re_im = jnp.dot(w_ref[...], frames, preferred_element_type=jnp.float32)
        re = re_im[:F]                                           # (F, t_pad)
        im = re_im[F:]
        power = re * re + im * im                                # power spectrogram

        mel = jnp.dot(fb_ref[...], power, preferred_element_type=jnp.float32)  # (N_MELS, t_pad)
        if t_real < t_pad:
            # Padded time lanes (incl. the roll wrap-around lane) are forced to the
            # log floor so they never win the per-sample max.
            lane = lax.broadcasted_iota(jnp.int32, mel.shape, 1)
            mel = jnp.where(lane < t_real, mel, 0.0)

        # norm_mel: clamp(1e-10).log10(); per-sample global max; clip to max-8; (x+4)/4
        log_spec = jnp.log10(jnp.maximum(mel, 1e-10))
        mx = jnp.max(log_spec)
        log_spec = jnp.maximum(log_spec, mx - 8.0)
        out_ref[0] = (log_spec + 4.0) * 0.25

    return log_mel_kernel


def log_mel_pallas(chunks, w_dft, fb_t, t_real, t_pad, bot_shift):
    b, hop, nc = chunks.shape
    return pl.pallas_call(
        _make_kernel(t_real, t_pad, bot_shift),
        out_shape=jax.ShapeDtypeStruct((b, N_MELS, t_pad), jnp.float32),
        grid=(b,),
        in_specs=[
            pl.BlockSpec((1, hop, nc), lambda i: (i, 0, 0)),
            pl.BlockSpec((2 * F, N_FFT), lambda i: (0, 0)),
            pl.BlockSpec((N_MELS, F), lambda i: (0, 0)),
        ],
        out_specs=pl.BlockSpec((1, N_MELS, t_pad), lambda i: (i, 0, 0)),
        compiler_params=pltpu.CompilerParams(dimension_semantics=("parallel",)),
    )(chunks, w_dft, fb_t)


# ---------------- wrapper: reflect pad + hop-chunk layout + kernel call ------
def audio_transform_forward(wav, w_dft, fb_t):
    """wav: (B, samples) f32 with samples % hop == 0 -> (B, n_mels, samples // hop)."""
    b, samples = wav.shape
    assert samples % HOP_LEN == 0
    t_real = samples // HOP_LEN                       # frames after spec[..., :-1]
    t_pad = _round_up(t_real, LANE)                   # lane-dense time axis
    # If there is a masked tail (t_real < t_pad) the roll wrap-around lane lands in it,
    # so nc == t_pad is enough; otherwise keep one extra 128-lane group of chunks.
    nc = t_pad if t_real < t_pad else t_pad + LANE

    pad = N_FFT // 2
    padded = jnp.pad(wav, ((0, 0), (pad, pad)), mode="reflect")      # center=True
    tot, cur = nc * HOP_LEN, samples + 2 * pad
    if tot >= cur:
        flat = jnp.pad(padded, ((0, 0), (0, tot - cur)))             # fuses with reflect pad
    else:
        flat = padded[:, :tot]                                       # only drops the dropped-frame chunk
    chunks = jnp.transpose(flat.reshape(b, nc, HOP_LEN), (0, 2, 1))  # (B, HOP, nc)

    out = log_mel_pallas(chunks, w_dft, fb_t, t_real, t_pad, _plus_one_chunk_shift(nc))
    if t_real != t_pad:
        out = out[:, :, :t_real]
    return out


# ---------------- pure-JAX reference (independent construction) --------------
def reference_forward(wav):
    b, samples = wav.shape
    pad = N_FFT // 2
    padded = jnp.pad(wav, ((0, 0), (pad, pad)), mode="reflect")
    n_frames = 1 + samples // HOP_LEN
    idx = np.arange(n_frames)[:, None] * HOP_LEN + np.arange(N_FFT)[None, :]
    frames = padded[:, idx][:, :-1, :]                               # (B, T, n_fft)
    frames = frames * jnp.asarray(hann_window(N_FFT), dtype=jnp.float32)[None, None, :]
    n = np.arange(N_FFT)[None, :]
    k = np.arange(N_FREQ)[:, None]
    ang = 2.0 * np.pi * k * n / N_FFT
    cos_t = jnp.asarray(np.cos(ang), dtype=jnp.float32)
    sin_t = jnp.asarray(-np.sin(ang), dtype=jnp.float32)
    hi = jax.lax.Precision.HIGHEST
    re = jnp.einsum("btn,fn->bft", frames, cos_t, precision=hi)
    im = jnp.einsum("btn,fn->bft", frames, sin_t, precision=hi)
    power = re * re + im * im
    fb = jnp.asarray(mel_fbanks_t(N_FREQ, F_MIN, F_MAX, N_MELS, SAMPLE_RATE),
                     dtype=jnp.float32)
    mel = jnp.einsum("mf,bft->bmt", fb, power, precision=hi)
    log_spec = jnp.log10(jnp.maximum(mel, 1e-10))
    mx = jnp.max(log_spec, axis=(1, 2), keepdims=True)
    log_spec = jnp.maximum(log_spec, mx - 8.0)
    return (log_spec + 4.0) / 4.0


if __name__ == "__main__":
    B = 2
    w_dft, fb_t = (jnp.asarray(a) for a in build_weights())
    key = jax.random.PRNGKey(0)

    # 160 frames: masked tail + trailing slice path.  256 frames: exact lane-dense path.
    for n_frames in (160, 256):
        samples = n_frames * HOP_LEN
        wav = jax.random.normal(jax.random.fold_in(key, n_frames), (B, samples),
                                dtype=jnp.float32)
        out = jax.block_until_ready(audio_transform_forward(wav, w_dft, fb_t))
        ref = jax.block_until_ready(reference_forward(wav))
        assert out.shape == (B, N_MELS, n_frames)
        assert out.dtype == jnp.float32
        np.testing.assert_allclose(np.asarray(out), np.asarray(ref), rtol=1e-4, atol=1e-4)

    print("KERNEL_OK")
</pallas_src>

<mosaic_0001>
module attributes {stable_mosaic.version = 11 : i64} {
  func.func @probe(%arg0: memref<8x128xf32, #tpu.memory_space<vmem>>, %arg1: memref<8x128xf32, #tpu.memory_space<vmem>>) attributes {dimension_semantics = [], scalar_prefetch = 0 : i64, scratch_operands = 0 : i64, tpu.core_type = #tpu.core_type<tc>} {
    %c0 = arith.constant 0 : index
    %c0_0 = arith.constant 0 : index
    %0 = vector.load %arg0[%c0, %c0_0] : memref<8x128xf32, #tpu.memory_space<vmem>>, vector<8x128xf32>
    %c1_i32 = arith.constant 1 : i32
    %1 = tpu.dynamic_rotate %0 by %c1_i32 dim 1 : vector<8x128xf32>, i32 -> vector<8x128xf32>
    %c0_1 = arith.constant 0 : index
    %c0_2 = arith.constant 0 : index
    %2 = vector.load %arg1[%c0_1, %c0_2] : memref<8x128xf32, #tpu.memory_space<vmem>>, vector<8x128xf32>
    tpu.vector_store %arg1[%c0_1, %c0_2], %1 {strides = array<i32>} : memref<8x128xf32, #tpu.memory_space<vmem>>, vector<8x128xf32>,
    return
  }
}

</mosaic_0001>

<llo_original>
// kernel: tpu_custom_call.1
$region0: #{tpu_custom_call.1}
  #allocation0 [shape = 'u32[]', space=smem, size = 0x4, offset = 0x4, fixed_abs, tag = 'smem constant byte address 0x4 - core index']
  #allocation1 [shape = 'u32[144,128]{1,0:T(1,128)}', space=vmem, size = 0x12000, scoped, tag = 'internal scratch']
  %s0 = inlined_call_operand.hbm [shape: f32[8,128], index: 0, kind: input, shape index: {}]
  %s1 = inlined_call_operand.hbm [shape: f32[8,128], index: 1, kind: output, shape index: {}]
  %s2 = sld [smem:[#allocation0]]
  $region18: #{tpu_custom_call.1} parent=0
    _
  %s4 = ssub.s32 1, %s2
  %s5 = scalar_select 0, %s4, %s2
  $region1: #{tpu_custom_call.1} parent=0
    #allocation2 [shape = 'u8[4096]{0}', space=vmem, size = 0x1000, scoped, tag = 'input window, operand 0, single buffered']
    #allocation3 [shape = 's32[1]{0}', space=sflag, size = 0x4, scoped, tag = 'scoped memory for tpu_custom_call.1']
    #allocation4 [shape = 's32[1]{0}', space=sflag, size = 0x4, scoped, tag = 'scoped memory for tpu_custom_call.1']
    #allocation5 [shape = 'u8[4096]{0}', space=vmem, size = 0x1000, scoped, tag = 'output window, operand 0, single buffered']
    %6 = vsyncpa [#allocation3], 0
    %7 = vsyncpa [#allocation4], 0
    // Predicated region
    $region2: #{tpu_custom_call.1} parent=1 // pred_check
      _
    $region3: #{tpu_custom_call.1} parent=1 // pred_check_branch
      %9 = sbr.rel (0) target = $region5
    $region4: #{tpu_custom_call.1} parent=1 // pred_region
      %s11 = ssub.s32 128, 128
      %12 = vsyncadd [#allocation3], %s11
      %s14 = sshll.u32 [#allocation2], 4
      %s15 = int_to_ptr.vmem [resolvable:$true] %s14
      %17 = dma.hbm_to_vmem [thread:$0]  %s0, 128, %s15, [#allocation3]
    $region5: #{tpu_custom_call.1} parent=1 // pred_fallthru
      _
    // Predicated region
    $region6: #{tpu_custom_call.1} parent=1 // pred_check
      _
    $region7: #{tpu_custom_call.1} parent=1 // pred_check_branch
      %19 = sbr.rel (0) target = $region9
    $region8: #{tpu_custom_call.1} parent=1 // pred_region
      %20 = dma.done [#allocation3], 128
    $region9: #{tpu_custom_call.1} parent=1 // pred_fallthru
      _
    %v21 = vld [vmem:[#allocation2] sm:$0xff]
    %22 = vrot.lane.b32.xlu0 %v21, 1
    %v23 = vpop.permute.xlu0 %22
    %24 = vst [vmem:[#allocation5] sm:$0xff] %v23
    // Predicated region
    $region10: #{tpu_custom_call.1} parent=1 // pred_check
      _
    $region11: #{tpu_custom_call.1} parent=1 // pred_check_branch
      %26 = sbr.rel (0) target = $region13
    $region12: #{tpu_custom_call.1} parent=1 // pred_region
      %s28 = ssub.s32 128, 128
      %29 = vsyncadd [#allocation4], %s28
      %s31 = sshll.u32 [#allocation5], 4
      %s32 = int_to_ptr.vmem [resolvable:$true] %s31
      %34 = dma.vmem_to_hbm [thread:$0]  %s32, 128, %s1, [#allocation4]
    $region13: #{tpu_custom_call.1} parent=1 // pred_fallthru
      _
    // Predicated region
    $region14: #{tpu_custom_call.1} parent=1 // pred_check
      _
    $region15: #{tpu_custom_call.1} parent=1 // pred_check_branch
      %36 = sbr.rel (0) target = $region17
    $region16: #{tpu_custom_call.1} parent=1 // pred_region
      %37 = dma.done [#allocation4], 128
    $region17: #{tpu_custom_call.1} parent=1 // pred_fallthru
      _
    %38 = vsyncpa [#allocation3], 1
    %39 = vsyncpa [#allocation4], 1

</llo_original>
